<compile_context>
chip_gen: v6e
topology: v6e:2x2x1
jax: 0.10.0
libtpu: 0.0.40
codegen_flags: <defaults>
</compile_context>

<pallas_src>
import functools

import jax
import jax.numpy as jnp
from jax.experimental import pallas as pl
from jax.experimental.pallas import tpu as pltpu


# ----------------------------------------------------------------------------
# VMEM budget + tile planning helpers
# ----------------------------------------------------------------------------
def _vmem_limit_bytes():
    """~3/4 of physical VMEM (capped); safe fallback if the query is unavailable."""
    cap = 64 * 1024 * 1024
    try:
        cap = int(getattr(pltpu.get_tpu_info(), "vmem_capacity_bytes", cap))
    except Exception:
        pass
    return max(32 * 1024 * 1024, min(cap * 3 // 4, 100 * 1024 * 1024))


_VMEM_LIMIT = _vmem_limit_bytes()
_TILE_PREFS = (512, 256, 128)   # multiples of the MXU width on all generations


def _plan_dim(dim, prefs=_TILE_PREFS):
    """Return (tile, padded_dim).  Small dims use a full-extent block (always
    legal); large non-divisible dims are zero-padded to a tile multiple so the
    grid never degenerates to a single un-pipelined step."""
    for t in prefs:
        if t <= dim and dim % t == 0:
            return t, dim
    if dim <= prefs[-1]:
        return dim, dim
    padded = -(-dim // prefs[-1]) * prefs[-1]
    for t in prefs:
        if padded % t == 0:
            return t, padded
    return prefs[-1], padded


def _pick_q_tile(n):
    """Largest divisor of n that is a multiple of 8 and <= 512, else full n."""
    for t in range(min(n, 512), 7, -1):
        if n % t == 0 and t % 8 == 0:
            return t
    return n   # full extent (legal); TODO(synk): pad query axis for odd large N


# ----------------------------------------------------------------------------
# Kernels
# ----------------------------------------------------------------------------
def _linear_kernel(x_ref, w_ref, b_ref, o_ref, acc_ref):
    """Tiled y = x @ w + b with f32 accumulation over the K grid axis."""
    @pl.when(pl.program_id(2) == 0)
    def _():
        acc_ref[...] = jnp.zeros_like(acc_ref)

    acc_ref[...] += jnp.dot(
        x_ref[...], w_ref[...], preferred_element_type=jnp.float32
    )

    @pl.when(pl.program_id(2) == pl.num_programs(2) - 1)
    def _():
        o_ref[...] = (acc_ref[...] + b_ref[...]).astype(o_ref.dtype)


def _mha_proj_kernel(q_ref, kv_ref, wp_ref, bp_ref, o_ref, *, num_heads, head_dim):
    """One (batch, query-tile) step of multi-head attention fused with the
    output projection.

    q_ref  : (1, tq, 3A) bf16  -- only q columns [0:A) are read (scale prefolded)
    kv_ref : (1, N,  3A) bf16  -- k columns [A:2A), v columns [2A:3A)
    wp_ref : (A, C)      bf16  -- output projection, VMEM-resident across steps
    bp_ref : (1, C)      f32   -- output projection bias
    o_ref  : (1, tq, C)  f32   -- single lane-dense store per step
    """
    all_head_dim = num_heads * head_dim
    acc = None
    # TODO(synk): lax.fori_loop over heads (pl.ds slices) if num_heads is large.
    for h in range(num_heads):
        lo = h * head_dim
        hi = lo + head_dim
        q = q_ref[0, :, lo:hi]                                     # (tq, hd)
        k = kv_ref[0, :, all_head_dim + lo:all_head_dim + hi]      # (N, hd)
        v = kv_ref[0, :, 2 * all_head_dim + lo:2 * all_head_dim + hi]

        # scores (scale already folded into the q projection weights)
        s = jnp.einsum("qd,kd->qk", q, k,
                       preferred_element_type=jnp.float32)         # (tq, N) f32
        m = jnp.max(s, axis=-1, keepdims=True)
        p = jnp.exp(s - m)                                          # f32, EUP
        l = jnp.sum(p, axis=-1, keepdims=True)

        o = jnp.einsum("qk,kd->qd", p.astype(v.dtype), v,
                       preferred_element_type=jnp.float32)          # (tq, hd) f32
        # Fold the softmax denominator into the O(tq*hd) head output (not the
        # O(tq*N) probability tile), then fold the output projection per head so
        # no narrow head_dim-wide stores are ever emitted.
        o = o * pl.reciprocal(l, approx=True)
        contrib = jnp.dot(o.astype(wp_ref.dtype), wp_ref[lo:hi, :],
                          preferred_element_type=jnp.float32)       # (tq, C)
        acc = contrib if acc is None else acc + contrib

    o_ref[0] = (acc + bp_ref[...]).astype(o_ref.dtype)


# ----------------------------------------------------------------------------
# Pallas wrappers
# ----------------------------------------------------------------------------
def pallas_linear(x, w, b, out_dtype):
    """x: (M, K), w: (K, P), b: (P,) -> (M, P). Tiled, f32 accumulator,
    zero-padding of non-divisible dims (sliced off afterwards)."""
    M, K = x.shape
    P = w.shape[1]
    tm, Mp = _plan_dim(M)
    tk, Kp = _plan_dim(K)
    tn, Pp = _plan_dim(P)

    if (Mp, Kp) != (M, K):
        x = jnp.pad(x, ((0, Mp - M), (0, Kp - K)))
    if (Kp, Pp) != (K, P):
        w = jnp.pad(w, ((0, Kp - K), (0, Pp - P)))
    if Pp != P:
        b = jnp.pad(b, (0, Pp - P))

    out = pl.pallas_call(
        _linear_kernel,
        out_shape=jax.ShapeDtypeStruct((Mp, Pp), out_dtype),
        grid_spec=pltpu.PrefetchScalarGridSpec(
            num_scalar_prefetch=0,
            grid=(Mp // tm, Pp // tn, Kp // tk),
            in_specs=[
                pl.BlockSpec((tm, tk), lambda i, j, k: (i, k)),
                pl.BlockSpec((tk, tn), lambda i, j, k: (k, j)),
                pl.BlockSpec((1, tn), lambda i, j, k: (0, j)),
            ],
            out_specs=pl.BlockSpec((tm, tn), lambda i, j, k: (i, j)),
            scratch_shapes=[pltpu.VMEM((tm, tn), jnp.float32)],
        ),
        compiler_params=pltpu.CompilerParams(
            dimension_semantics=("parallel", "parallel", "arbitrary"),
            vmem_limit_bytes=_VMEM_LIMIT,
        ),
    )(x, w, b.reshape(1, Pp))

    if (Mp, Pp) != (M, P):
        out = out[:M, :P]
    return out


def pallas_mha_proj(qkv, w_proj, b_proj, num_heads, head_dim, out_dtype):
    """qkv: (B, N, 3*A) laid out [q | k | v] (head-major within each slab, scale
    pre-folded into q), w_proj: (A, C) bf16, b_proj: (1, C) f32 -> (B, N, C)."""
    B, N, three_a = qkv.shape
    all_head_dim = num_heads * head_dim
    C = w_proj.shape[1]
    tq = _pick_q_tile(N)
    nq = N // tq

    kernel = functools.partial(_mha_proj_kernel,
                               num_heads=num_heads, head_dim=head_dim)
    return pl.pallas_call(
        kernel,
        out_shape=jax.ShapeDtypeStruct((B, N, C), out_dtype),
        grid=(B, nq),
        in_specs=[
            # query rows (the k/v columns of this block are simply never read)
            pl.BlockSpec((1, tq, three_a), lambda b, qi: (b, qi, 0)),
            # full-N kv slab; constant block index per batch -> fetched once per b
            pl.BlockSpec((1, N, three_a), lambda b, qi: (b, 0, 0)),
            pl.BlockSpec((all_head_dim, C), lambda b, qi: (0, 0)),   # w_proj resident
            pl.BlockSpec((1, C), lambda b, qi: (0, 0)),              # b_proj resident
        ],
        out_specs=pl.BlockSpec((1, tq, C), lambda b, qi: (b, qi, 0)),
        compiler_params=pltpu.CompilerParams(
            dimension_semantics=("parallel", "parallel"),   # megacore over B and q tiles
            vmem_limit_bytes=_VMEM_LIMIT,
        ),
    )(qkv, qkv, w_proj, b_proj)


# ----------------------------------------------------------------------------
# Full module forward
# ----------------------------------------------------------------------------
def attention_forward(x, params, num_heads, scale, H=None, W=None, rel_pos_bias=None):
    # rel_pos_bias / H / W are unused by the reference forward as well.
    B, N, C = x.shape
    three_a = params["w_qkv"].shape[1]
    all_head_dim = three_a // 3
    head_dim = all_head_dim // num_heads

    f32 = jnp.float32
    cdt = jnp.bfloat16

    # Fold the attention scale into the q columns of the qkv projection (free,
    # done in f32 before the bf16 cast).  softmax(scale*(Wq x + bq) @ k^T) is
    # identical to scaling Wq and bq.
    col_scale = jnp.concatenate(
        [jnp.full((all_head_dim,), scale, f32), jnp.ones((2 * all_head_dim,), f32)])
    w_qkv = (params["w_qkv"].astype(f32) * col_scale[None, :]).astype(cdt)
    b_qkv = params["b_qkv"].astype(f32) * col_scale
    w_proj = params["w_proj"].astype(cdt)
    b_proj = params["b_proj"].reshape(1, C).astype(f32)

    # qkv = self.qkv(x)  ->  (B*N, 3*all_head_dim), bf16 (feeds attention)
    qkv = pallas_linear(x.astype(cdt).reshape(B * N, C), w_qkv, b_qkv, out_dtype=cdt)
    # Free reshape only (same memory layout); no transpose / permute round trips.
    qkv = qkv.reshape(B, N, three_a)

    # softmax(q @ k^T) @ v for all heads, FUSED with x = self.proj(x):
    # output directly in (B, N, C) f32.
    out = pallas_mha_proj(qkv, w_proj, b_proj, num_heads, head_dim, out_dtype=f32)
    return out


# ----------------------------------------------------------------------------
# Deterministic parameter init (synthetic, no checkpoint)
# ----------------------------------------------------------------------------
def init_params(key, dim, num_heads, qkv_bias=False, attn_head_dim=None):
    head_dim = dim // num_heads if attn_head_dim is None else attn_head_dim
    all_head_dim = head_dim * num_heads
    k1, k2, k3 = jax.random.split(key, 3)
    params = {
        # stored as (in_features, out_features) so forward is x @ W + b
        "w_qkv": jax.random.normal(k1, (dim, all_head_dim * 3), jnp.float32) * 0.02,
        "b_qkv": (jnp.zeros((all_head_dim * 3,), jnp.float32) if not qkv_bias
                  else jax.random.normal(k3, (all_head_dim * 3,), jnp.float32) * 0.02),
        "w_proj": jax.random.normal(k2, (all_head_dim, dim), jnp.float32) * 0.02,
        "b_proj": jnp.zeros((dim,), jnp.float32),
    }
    scale = head_dim ** (-0.5)
    return params, scale


# ----------------------------------------------------------------------------
# Pure-JAX f32 reference for correctness sanity check
# ----------------------------------------------------------------------------
def attention_reference(x, params, num_heads, scale):
    B, N, C = x.shape
    all_head_dim = params["w_qkv"].shape[1] // 3
    head_dim = all_head_dim // num_heads
    qkv = x.reshape(B * N, C) @ params["w_qkv"] + params["b_qkv"]
    qkv = qkv.reshape(B, N, 3, num_heads, head_dim).transpose(2, 0, 3, 1, 4)
    q, k, v = qkv[0] * scale, qkv[1], qkv[2]
    attn = jnp.einsum("bhnd,bhmd->bhnm", q, k)
    attn = jax.nn.softmax(attn, axis=-1)
    out = jnp.einsum("bhnm,bhmd->bhnd", attn, v)
    out = out.transpose(0, 2, 1, 3).reshape(B, N, all_head_dim)
    return (out.reshape(B * N, all_head_dim) @ params["w_proj"]
            + params["b_proj"]).reshape(B, N, C)


if __name__ == "__main__":
    # Small shapes consistent with the module: dim=32, num_heads=4, N=H*W=16
    B, H, W = 2, 4, 4
    N = H * W
    dim, num_heads = 32, 4

    key = jax.random.PRNGKey(0)
    kx, kp = jax.random.split(key)
    x = jax.random.normal(kx, (B, N, dim), jnp.float32)
    params, scale = init_params(kp, dim, num_heads)

    out = attention_forward(x, params, num_heads, scale, H=H, W=W)
    out = jax.block_until_ready(out)

    ref = attention_reference(x, params, num_heads, scale)
    assert out.shape == (B, N, dim)
    # bf16 MXU inputs + approx reciprocal -> loosened tolerance vs the f32 reference
    assert jnp.allclose(out, ref, atol=2e-2, rtol=2e-2), "mismatch vs JAX reference"

    print("KERNEL_OK")
</pallas_src>

<mosaic_0001>
module attributes {stable_mosaic.version = 11 : i64} {
  func.func @_linear_kernel(%arg0: i32, %arg1: i32, %arg2: i32, %arg3: memref<32x32xbf16, #tpu.memory_space<vmem>>, %arg4: memref<32x96xbf16, #tpu.memory_space<vmem>>, %arg5: memref<1x96xf32, #tpu.memory_space<vmem>>, %arg6: memref<32x96xbf16, #tpu.memory_space<vmem>>, %arg7: memref<32x96xf32, #tpu.memory_space<vmem>>) attributes {dimension_semantics = [#tpu.dimension_semantics<parallel>, #tpu.dimension_semantics<parallel>, #tpu.dimension_semantics<arbitrary>], iteration_bounds = array<i64: 1, 1, 1>, scalar_prefetch = 0 : i64, scratch_operands = 1 : i64, tpu.core_type = #tpu.core_type<tc>, window_params = [{transform_indices = @transform_0, window_bounds = array<i64: 32, 32>}, {transform_indices = @transform_1, window_bounds = array<i64: 32, 96>}, {transform_indices = @transform_2, window_bounds = array<i64: 1, 96>}, {transform_indices = @transform_3, window_bounds = array<i64: 32, 96>}]} {
    %c0_i32 = arith.constant 0 : i32
    %0 = arith.cmpi eq, %arg2, %c0_i32 : i32
    %1 = arith.extui %0 : i1 to i32
    %c0_i32_0 = arith.constant 0 : i32
    %2 = arith.cmpi ne, %1, %c0_i32_0 : i32
    scf.if %2 {
      %cst_10 = arith.constant 0.000000e+00 : f32
      %12 = vector.broadcast %cst_10 : f32 to vector<32x96xf32>
      %c0_11 = arith.constant 0 : index
      %c0_12 = arith.constant 0 : index
      %13 = vector.load %arg7[%c0_11, %c0_12] : memref<32x96xf32, #tpu.memory_space<vmem>>, vector<32x96xf32>
      tpu.vector_store %arg7[%c0_11, %c0_12], %12 {strides = array<i32>} : memref<32x96xf32, #tpu.memory_space<vmem>>, vector<32x96xf32>,
    } else {
    }
    %c0 = arith.constant 0 : index
    %c0_1 = arith.constant 0 : index
    %3 = vector.load %arg7[%c0, %c0_1] : memref<32x96xf32, #tpu.memory_space<vmem>>, vector<32x96xf32>
    %c0_2 = arith.constant 0 : index
    %c0_3 = arith.constant 0 : index
    %4 = vector.load %arg3[%c0_2, %c0_3] : memref<32x32xbf16, #tpu.memory_space<vmem>>, vector<32x32xbf16>
    %c0_4 = arith.constant 0 : index
    %c0_5 = arith.constant 0 : index
    %5 = vector.load %arg4[%c0_4, %c0_5] : memref<32x96xbf16, #tpu.memory_space<vmem>>, vector<32x96xbf16>
    %cst = arith.constant dense<0.000000e+00> : vector<32x96xf32>
    %6 = tpu.matmul %4, %5, %cst {dimension_numbers = #tpu.dot_dimension_numbers<[1], [0], [0], [1], [0, 0, 1, 1], [], []>} : vector<32x32xbf16>, vector<32x96xbf16>, vector<32x96xf32> -> vector<32x96xf32>
    %7 = arith.addf %3, %6 : vector<32x96xf32>
    %c0_6 = arith.constant 0 : index
    %c0_7 = arith.constant 0 : index
    %8 = vector.load %arg7[%c0_6, %c0_7] : memref<32x96xf32, #tpu.memory_space<vmem>>, vector<32x96xf32>
    tpu.vector_store %arg7[%c0_6, %c0_7], %7 {strides = array<i32>} : memref<32x96xf32, #tpu.memory_space<vmem>>, vector<32x96xf32>,
    %c0_i32_8 = arith.constant 0 : i32
    %9 = arith.cmpi eq, %arg2, %c0_i32_8 : i32
    %10 = arith.extui %9 : i1 to i32
    %c0_i32_9 = arith.constant 0 : i32
    %11 = arith.cmpi ne, %10, %c0_i32_9 : i32
    scf.if %11 {
      %c0_10 = arith.constant 0 : index
      %c0_11 = arith.constant 0 : index
      %12 = vector.load %arg7[%c0_10, %c0_11] : memref<32x96xf32, #tpu.memory_space<vmem>>, vector<32x96xf32>
      %c0_12 = arith.constant 0 : index
      %c0_13 = arith.constant 0 : index
      %13 = vector.load %arg5[%c0_12, %c0_13] : memref<1x96xf32, #tpu.memory_space<vmem>>, vector<1x96xf32>
      %14 = vector.broadcast %13 : vector<1x96xf32> to vector<32x96xf32>
      %15 = arith.addf %12, %14 : vector<32x96xf32>
      %16 = arith.truncf %15 : vector<32x96xf32> to vector<32x96xbf16>
      %c0_14 = arith.constant 0 : index
      %c0_15 = arith.constant 0 : index
      %17 = vector.load %arg6[%c0_14, %c0_15] : memref<32x96xbf16, #tpu.memory_space<vmem>>, vector<32x96xbf16>
      tpu.vector_store %arg6[%c0_14, %c0_15], %16 {strides = array<i32>} : memref<32x96xbf16, #tpu.memory_space<vmem>>, vector<32x96xbf16>,
    } else {
    }
    return
  }
  func.func @transform_0(%arg0: i32, %arg1: i32, %arg2: i32) -> (i32, i32) {
    %c0_i32 = arith.constant 0 : i32
    return %arg0, %arg2 : i32, i32
  }
  func.func @transform_1(%arg0: i32, %arg1: i32, %arg2: i32) -> (i32, i32) {
    %c0_i32 = arith.constant 0 : i32
    return %arg2, %arg1 : i32, i32
  }
  func.func @transform_2(%arg0: i32, %arg1: i32, %arg2: i32) -> (i32, i32) {
    %c0_i32 = arith.constant 0 : i32
    %c0_i32_0 = arith.constant 0 : i32
    return %c0_i32, %arg1 : i32, i32
  }
  func.func @transform_3(%arg0: i32, %arg1: i32, %arg2: i32) -> (i32, i32) {
    %c0_i32 = arith.constant 0 : i32
    return %arg0, %arg1 : i32, i32
  }
}

</mosaic_0001>

<llo_original>
// kernel: tpu_custom_call.1
$region0: #{tpu_custom_call.1}
  #allocation0 [shape = 'u32[]', space=smem, size = 0x4, offset = 0x4, fixed_abs, tag = 'smem constant byte address 0x4 - core index']
  #allocation1 [shape = 'u32[144,128]{1,0:T(1,128)}', space=vmem, size = 0x12000, scoped, tag = 'internal scratch']
  #allocation2 [shape = 'f32[32,96]{1,0:T(8,128)}', space=vmem, size = 0x4000, scoped, tag = 'scratch operand']
  %s0 = inlined_call_operand.hbm [shape: bf16[32,32], index: 0, kind: input, shape index: {}]
  %s1 = inlined_call_operand.hbm [shape: bf16[32,96], index: 1, kind: input, shape index: {}]
  %s2 = inlined_call_operand.vmem [shape: f32[1,96], index: 2, kind: input, shape index: {}]
  %s3 = inlined_call_operand.hbm [shape: bf16[32,96], index: 3, kind: output, shape index: {}]
  %s4 = sld [smem:[#allocation0]]
  $region38: #{tpu_custom_call.1} parent=0
    _
  %s6 = ssub.s32 1, %s4
  %s7 = scalar_select 0, %s6, %s4
  $region1: #{tpu_custom_call.1} parent=0
    #allocation3 [shape = 'u8[8192]{0}', space=vmem, size = 0x2000, scoped, tag = 'input window, operand 0, single buffered']
    #allocation4 [shape = 's32[1]{0}', space=sflag, size = 0x4, scoped, tag = 'scoped memory for tpu_custom_call.1']
    #allocation5 [shape = 's32[1]{0}', space=sflag, size = 0x4, scoped, tag = 'scoped memory for tpu_custom_call.1']
    #allocation6 [shape = 'u8[8192]{0}', space=vmem, size = 0x2000, scoped, tag = 'input window, operand 1, single buffered']
    #allocation7 [shape = 's32[1]{0}', space=sflag, size = 0x4, scoped, tag = 'scoped memory for tpu_custom_call.1']
    #allocation8 [shape = 'u8[8192]{0}', space=vmem, size = 0x2000, scoped, tag = 'output window, operand 0, single buffered']
    %8 = vsyncpa [#allocation4], 0
    %9 = vsyncpa [#allocation7], 0
    %10 = vsyncpa [#allocation5], 0
    // Predicated region
    $region2: #{tpu_custom_call.1} parent=1 // pred_check
      _
    $region3: #{tpu_custom_call.1} parent=1 // pred_check_branch
      %12 = sbr.rel (0) target = $region5
    $region4: #{tpu_custom_call.1} parent=1 // pred_region
      %s14 = ssub.s32 256, 256
      %15 = vsyncadd [#allocation4], %s14
      %s16 = sshll.u32 [#allocation3], 4
      %s17 = int_to_ptr.vmem [resolvable:$true] %s16
      %22 = dma.hbm_to_vmem [thread:$0]  %s0, 256, %s17, [#allocation4], 64, 64, 4
    $region5: #{tpu_custom_call.1} parent=1 // pred_fallthru
      _
    // Predicated region
    $region6: #{tpu_custom_call.1} parent=1 // pred_check
      _
    $region7: #{tpu_custom_call.1} parent=1 // pred_check_branch
      %24 = sbr.rel (0) target = $region9
    $region8: #{tpu_custom_call.1} parent=1 // pred_region
      %s26 = ssub.s32 256, 256
      %27 = vsyncadd [#allocation7], %s26
      %s28 = sshll.u32 [#allocation6], 4
      %s29 = int_to_ptr.vmem [resolvable:$true] %s28
      %34 = dma.hbm_to_vmem [thread:$0]  %s1, 256, %s29, [#allocation7], 64, 64, 4
    $region9: #{tpu_custom_call.1} parent=1 // pred_fallthru
      _
    // Predicated region
    $region10: #{tpu_custom_call.1} parent=1 // pred_check
      _
    $region11: #{tpu_custom_call.1} parent=1 // pred_check_branch
      %36 = sbr.rel (0) target = $region13
    $region12: #{tpu_custom_call.1} parent=1 // pred_region
      _
    $region13: #{tpu_custom_call.1} parent=1 // pred_fallthru
      _
    // Predicated region
    $region14: #{tpu_custom_call.1} parent=1 // pred_check
      _
    $region15: #{tpu_custom_call.1} parent=1 // pred_check_branch
      %38 = sbr.rel (0) target = $region17
    $region16: #{tpu_custom_call.1} parent=1 // pred_region
      %39 = dma.done [#allocation4], 256
    $region17: #{tpu_custom_call.1} parent=1 // pred_fallthru
      _
    // Predicated region
    $region18: #{tpu_custom_call.1} parent=1 // pred_check
      _
    $region19: #{tpu_custom_call.1} parent=1 // pred_check_branch
      %41 = sbr.rel (0) target = $region21
    $region20: #{tpu_custom_call.1} parent=1 // pred_region
      %42 = dma.done [#allocation7], 256
    $region21: #{tpu_custom_call.1} parent=1 // pred_fallthru
      _
    %p44 = scmp.eq.s32.totalorder 0, 0
    // Predicated region
    $region22: #{tpu_custom_call.1} parent=1 // pred_check
      %p45 = pneg %p44
    $region23: #{tpu_custom_call.1} parent=1 // pred_check_branch
      %47 = sbr.rel (%p45) target = $region25
    $region24: #{tpu_custom_call.1} parent=1 // pred_region
      %vm48 = vcmask 785408
      %49 = vst.msk [vmem:[#allocation2] sm:$0xff] %vm48, 0.0
      %50 = vst.msk [vmem:[#allocation2 + $0x8] sm:$0xff] %vm48, 0.0
      %51 = vst.msk [vmem:[#allocation2 + $0x10] sm:$0xff] %vm48, 0.0
      %52 = vst.msk [vmem:[#allocation2 + $0x18] sm:$0xff] %vm48, 0.0
    $region25: #{tpu_custom_call.1} parent=1 // pred_fallthru
      _
    %v53 = vld [vmem:[#allocation2] sm:$0xff]
    %v54 = vld [vmem:[#allocation2 + $0x8] sm:$0xff]
    %v55 = vld [vmem:[#allocation2 + $0x10] sm:$0xff]
    %v56 = vld [vmem:[#allocation2 + $0x18] sm:$0xff]
    %v57 = vld [vmem:[#allocation3] sm:$0xf]
    %v58 = vld [vmem:[#allocation3 + $0x4] sm:$0xf]
    %v59 = vld [vmem:[#allocation3 + $0x8] sm:$0xf]
    %v60 = vld [vmem:[#allocation3 + $0xc] sm:$0xf]
    %v61 = vld [vmem:[#allocation6] sm:$0xf]
    %v62 = vld [vmem:[#allocation6 + $0x4] sm:$0xf]
    %v63 = vld [vmem:[#allocation6 + $0x8] sm:$0xf]
    %v64 = vld [vmem:[#allocation6 + $0xc] sm:$0xf]
    %v69 = vunpack.c.l.b16 %v57
    %v70 = vunpack.c.l.b16 %v58
    %v71 = vunpack.c.l.b16 %v59
    %v72 = vunpack.c.l.b16 %v60
    %v73 = vpack.c.b16 %v70, %v69
    %v74 = vpack.c.b16 %v72, %v71
    %v79 = vunpack.c.l.b16 %v61
    %v80 = vunpack.c.l.b16 %v62
    %v81 = vunpack.c.l.b16 %v63
    %v82 = vunpack.c.l.b16 %v64
    %v83 = vpack.c.b16 %v80, %v79
    %v84 = vpack.c.b16 %v82, %v81
    %vm87 = vcmask 261120
    %v89 = vsel %vm87, %v73, 0
    %v92 = vsel %vm87, %v74, 0
    %94 = vmatprep.subr.bf16.mxu0 0
    %95 = vmatpush1.bf16.msra.mxu0 0
    %96 = vmatprep.subr.bf16.mxu0 0
    %97 = vmatpush1.bf16.msra.mxu0 0
    %98 = vmatprep.subr.bf16.mxu0 0
    %99 = vmatpush1.bf16.msra.mxu0 0
    %100 = vmatprep.subr.bf16.mxu0 0
    %101 = vmatpush1.bf16.msra.mxu0 0
    %102 = vmatprep.subr.bf16.mxu0 0
    %103 = vmatpush1.bf16.msra.mxu0 0
    %104 = vmatprep.subr.bf16.mxu0 0
    %105 = vmatpush1.bf16.msra.mxu0 0
    %106 = vmatprep.subr.bf16.mxu0 0
    %107 = vmatpush1.bf16.msra.mxu0 %v84
    %108 = vmatprep.subr.bf16.mxu0 0
    %109 = vmatpush1.bf16.msra.mxu0 %v83
    %110 = vmatprep.subr.bf16.mxu0 0
    %111 = vmatpush2.bf16.msra.mxu0 0
    %112 = vmatprep.subr.bf16.mxu0 0
    %113 = vmatpush2.bf16.msra.mxu0 0
    %114 = vmatprep.subr.bf16.mxu0 0
    %115 = vmatpush2.bf16.msra.mxu0 0
    %116 = vmatprep.subr.bf16.mxu0 0
    %117 = vmatpush2.bf16.msra.mxu0 0
    %118 = vmatprep.subr.bf16.mxu0 0
    %119 = vmatpush2.bf16.msra.mxu0 0
    %120 = vmatprep.subr.bf16.mxu0 0
    %121 = vmatpush2.bf16.msra.mxu0 0
    %122 = vmatprep.subr.bf16.mxu0 0
    %123 = vmatpush2.bf16.msra.mxu0 0
    %124 = vmatprep.subr.bf16.mxu0 0
    %125 = vmatpush2.bf16.msra.mxu0 0
    %126 = vmatprep.mubr.bf16.mxu0 0
    %127 = vmatmul.mubr.bf16.gmra.mxu0 %v89
    %v128 = vpop.f32.mrf.mxu0
    %v129 = vadd.f32 0.0, %v128
    %v130 = vpop.f32.mrf.mxu0
    %v131 = vpop.f32.mrf.mxu0
    %v132 = vadd.f32 0.0, %v131
    %v133 = vpop.f32.mrf.mxu0
    %134 = vmatprep.mubr.bf16.mxu0 0
    %135 = vmatmul.mubr.bf16.gmra.mxu0 %v92
    %v136 = vpop.f32.mrf.mxu0
    %v137 = vadd.f32 0.0, %v136
    %v138 = vpop.f32.mrf.mxu0
    %v139 = vpop.f32.mrf.mxu0
    %v140 = vadd.f32 0.0, %v139
    %v141 = vpop.f32.mrf.mxu0
    %142 = vdwg.mxu0
    %v143 = vadd.f32 %v53, %v129
    %v144 = vadd.f32 %v54, %v132
    %v145 = vadd.f32 %v55, %v137
    %v146 = vadd.f32 %v56, %v140
    %vm147 = vcmask 785408
    %148 = vst.msk [vmem:[#allocation2] sm:$0xff] %vm147, %v143
    %149 = vst.msk [vmem:[#allocation2 + $0x8] sm:$0xff] %vm147, %v144
    %150 = vst.msk [vmem:[#allocation2 + $0x10] sm:$0xff] %vm147, %v145
    %151 = vst.msk [vmem:[#allocation2 + $0x18] sm:$0xff] %vm147, %v146
    // Predicated region
    $region26: #{tpu_custom_call.1} parent=1 // pred_check
      %p152 = pneg %p44
    $region27: #{tpu_custom_call.1} parent=1 // pred_check_branch
      %154 = sbr.rel (%p152) target = $region29
    $region28: #{tpu_custom_call.1} parent=1 // pred_region
      %v155 = vld [vmem:[#allocation2] sm:$0xff]
      %v156 = vld [vmem:[#allocation2 + $0x8] sm:$0xff]
      %v157 = vld [vmem:[#allocation2 + $0x10] sm:$0xff]
      %v158 = vld [vmem:[#allocation2 + $0x18] sm:$0xff]
      %v159 = vld [vmem:[%s2] sm:$0x1]
      %v161 = vlaneseq
      %v162 = vshrl.u32 %v161, 7
      %v163 = vsub.s32 0, %v162
      %v164 = vrot.slane %v159, %v163
      %v166 = vadd.f32 %v155, %v164
      %v167 = vadd.f32 %v156, %v164
      %v168 = vadd.f32 %v157, %v164
      %v169 = vadd.f32 %v158, %v164
      %v170 = vpack.c.bf16 %v167, %v166
      %v171 = vpack.c.bf16 %v169, %v168
      %v174 = vunpack.c.l.b16 %v170
      %v175 = vunpack.c.h.b16 %v170
      %v176 = vunpack.c.l.b16 %v171
      %v177 = vunpack.c.h.b16 %v171
      %v178 = vpack.c.b16 %v174, %v174
      %v179 = vpack.c.b16 %v175, %v175
      %v180 = vpack.c.b16 %v176, %v176
      %v181 = vpack.c.b16 %v177, %v177
      %vm186 = vcmask 781312
      %187 = vst.msk [vmem:[#allocation8] sm:$0xf] %vm186, %v178
      %188 = vst.msk [vmem:[#allocation8 + $0x4] sm:$0xf] %vm186, %v179
      %189 = vst.msk [vmem:[#allocation8 + $0x8] sm:$0xf] %vm186, %v180
      %190 = vst.msk [vmem:[#allocation8 + $0xc] sm:$0xf] %vm186, %v181
    $region29: #{tpu_custom_call.1} parent=1 // pred_fallthru
      _
    // Predicated region
    $region30: #{tpu_custom_call.1} parent=1 // pred_check
      _
    $region31: #{tpu_custom_call.1} parent=1 // pred_check_branch
      %192 = sbr.rel (0) target = $region33
    $region32: #{tpu_custom_call.1} parent=1 // pred_region
      %s194 = ssub.s32 256, 256
      %195 = vsyncadd [#allocation5], %s194
      %s196 = sshll.u32 [#allocation8], 4
      %s197 = int_to_ptr.vmem [resolvable:$true] %s196
      %202 = dma.vmem_to_hbm [thread:$0]  %s197, 256, %s3, [#allocation5], 64, 64, 4
    $region33: #{tpu_custom_call.1} parent=1 // pred_fallthru
      _
    // Predicated region
    $region34: #{tpu_custom_call.1} parent=1 // pred_check
      _
    $region35: #{tpu_custom_call.1} parent=1 // pred_check_branch
      %204 = sbr.rel (0) target = $region37
    $region36: #{tpu_custom_call.1} parent=1 // pred_region
      %205 = dma.done [#allocation5], 256
    $region37: #{tpu_custom_call.1} parent=1 // pred_fallthru
      _
    %206 = vsyncpa [#allocation4], 1
    %207 = vsyncpa [#allocation7], 1
    %208 = vsyncpa [#allocation5], 1

</llo_original>
